<compile_context>
chip_gen: v7x
topology: tpu7x:2x2x1
jax: 0.10.0
libtpu: 0.0.40
codegen_flags: <defaults>
</compile_context>

<pallas_src>
import jax
import jax.numpy as jnp
from jax.experimental import pallas as pl
from jax.experimental.pallas import tpu as pltpu


def deep_biaffine_kernel(x1_ref, x2t_ref, w1t_ref, b1_ref, w2a_ref, b2a_ref,
                         wmain_ref, wones_ref, out_ref):
    # x1_ref:(L1,I1)  x2t_ref:(I2,L2)  w1t_ref:(I1,H)  b1_ref:(1,H)
    # w2a_ref:(Kpad,I2)  b2a_ref:(Kpad,1)  wmain_ref:(H,O*Kpad)  wones_ref:(1,O*Kpad)
    # out_ref:(O,L1,L2)
    O, L1, L2 = out_ref.shape
    Kpad = w2a_ref.shape[0]
    f32 = jnp.float32

    # W1 Linear + ReLU.  (dropout is identity -- p=0 / eval mode)
    h1 = jnp.maximum(
        jnp.dot(x1_ref[...], w1t_ref[...], preferred_element_type=f32) + b1_ref[...],
        0.0)                                                        # (L1, H)

    # W2 Linear + ReLU, computed transposed.  w2a/b2a are padded so the result
    # already IS the bias-augmented, zero-padded h2^T:
    #   rows [0,H) = relu(W2 x2 + b2)^T, row H = 1 (the "+1" column), rows (H,Kpad) = 0.
    h2a = jnp.maximum(
        jnp.dot(w2a_ref[...], x2t_ref[...], preferred_element_type=f32) + b2a_ref[...],
        0.0)                                                        # (Kpad, L2)

    # First biaffine matmul, fused over all O classes (lane width O*Kpad >= 128).
    # wones is the weight row multiplying h1a's appended ones column (broadcast add).
    m = jnp.dot(h1, wmain_ref[...], preferred_element_type=f32) + wones_ref[...]  # (L1, O*Kpad)

    # Second stage: one (L1,Kpad) @ (Kpad,L2) per class.  Slices start at o*Kpad,
    # a multiple of 128, so they are pure lane-aligned vreg selections.  Output
    # stores are lane-dense along L2.
    for o in range(O):
        s = jnp.dot(m[:, o * Kpad:(o + 1) * Kpad], h2a, preferred_element_type=f32)
        out_ref[o] = s.astype(out_ref.dtype)


def prepare_params(W1, b1, W2, b2, Wb, lane=128):
    """One-time parameter re-layout (do this at load time, NOT per forward).

    W1:(H,I1) b1:(H,) W2:(H,I2) b2:(H,)  -- the two nn.Linear layers
    Wb:(H+1,H+1,O)                       -- PairwiseBilinear.weight
    """
    H, I1 = W1.shape
    H2, I2 = W2.shape
    D1p, D2p, O = Wb.shape
    assert H2 == H and D1p == H + 1 and D2p == H + 1
    Kpad = ((D2p + lane - 1) // lane) * lane

    w1t = jnp.transpose(W1)                     # (I1, H)
    b1r = b1.reshape(1, H)

    # Pad W2/b2 so relu(W2aug @ x2^T + b2aug) directly yields the bias-augmented,
    # zero-padded h2^T (ones row at index H via relu(0 + 1) = 1).
    w2aug = jnp.zeros((Kpad, I2), W2.dtype).at[:H].set(W2)
    b2aug = jnp.zeros((Kpad, 1), b2.dtype).at[:H, 0].set(b2).at[H, 0].set(1.0)

    # Effective biaffine weight reproducing torch's view quirk exactly:
    #   W_eff[d1, o, d2] = Wb.reshape(D1p, D2p*O)[d1, o*D2p + d2]
    w_eff = Wb.reshape(D1p, D2p * O).reshape(D1p, O, D2p)          # (D1p, O, D2p)
    w_eff_pad = jnp.zeros((D1p, O, Kpad), Wb.dtype).at[:, :, :D2p].set(w_eff)
    wmain = w_eff_pad[:H].reshape(H, O * Kpad)   # multiplies h1
    wones = w_eff_pad[H].reshape(1, O * Kpad)    # multiplies h1a's appended ones column
    return (w1t, b1r, w2aug, b2aug, wmain, wones)


def deep_biaffine_scorer(input1, input2, params, *, torch_layout=True):
    """Forward of DeepBiaffineScorer(pairwise=True), eval mode.

    input1:(N,L1,I1) input2:(N,L2,I2); params from prepare_params().
    Returns (N, L1, L2, O) if torch_layout else the kernel-native (N, O, L1, L2)
    (lane-dense, no extra HBM transpose pass).
    """
    w1t, b1r, w2aug, b2aug, wmain, wones = params
    N, L1, I1 = input1.shape
    N2, L2, I2 = input2.shape
    H = w1t.shape[1]
    Kpad = w2aug.shape[0]
    OKpad = wmain.shape[1]
    O = OKpad // Kpad
    assert N == N2 and w1t.shape[0] == I1 and w2aug.shape[1] == I2

    # Put L2 on the lane axis once, in the wrapper, so the kernel's second matmul
    # is a plain A @ B (in a real pipeline, fold this into how input2 is produced).
    x2t = jnp.transpose(input2, (0, 2, 1))      # (N, I2, L2)

    flops = 2 * N * (L1 * I1 * H + Kpad * I2 * L2 + L1 * H * OKpad + O * L1 * Kpad * L2)
    bytes_accessed = 4 * (input1.size + x2t.size + w1t.size + b1r.size + w2aug.size
                          + b2aug.size + wmain.size + wones.size + N * O * L1 * L2)

    out_k = pl.pallas_call(
        deep_biaffine_kernel,
        out_shape=jax.ShapeDtypeStruct((N, O, L1, L2), input1.dtype),
        grid_spec=pltpu.PrefetchScalarGridSpec(
            num_scalar_prefetch=0,
            grid=(N,),
            in_specs=[
                pl.BlockSpec((None, L1, I1), lambda n: (n, 0, 0)),   # input1
                pl.BlockSpec((None, I2, L2), lambda n: (n, 0, 0)),   # input2^T
                pl.BlockSpec((I1, H), lambda n: (0, 0)),             # W1^T    (fetched once)
                pl.BlockSpec((1, H), lambda n: (0, 0)),              # b1
                pl.BlockSpec((Kpad, I2), lambda n: (0, 0)),          # W2 (aug)
                pl.BlockSpec((Kpad, 1), lambda n: (0, 0)),           # b2 (aug)
                pl.BlockSpec((H, OKpad), lambda n: (0, 0)),          # biaffine main
                pl.BlockSpec((1, OKpad), lambda n: (0, 0)),          # biaffine ones-row
            ],
            out_specs=pl.BlockSpec((None, O, L1, L2), lambda n: (n, 0, 0, 0)),
        ),
        compiler_params=pltpu.CompilerParams(dimension_semantics=("parallel",)),
        cost_estimate=pl.CostEstimate(flops=flops, transcendentals=0,
                                      bytes_accessed=bytes_accessed),
    )(input1, x2t, w1t, b1r, w2aug, b2aug, wmain, wones)

    if torch_layout:
        # torch returns (N, L1, L2, O).  Consumers that accept (N, O, L1, L2) should
        # pass torch_layout=False and skip this extra HBM pass.
        return jnp.transpose(out_k, (0, 2, 3, 1))
    return out_k


def torch_semantics_ref(input1, input2, W1, b1, W2, b2, Wb):
    """Pure-JAX mirror of the torch forward (Linear+ReLU, cat-ones, mm/view/bmm/view/transpose)."""
    N, L1, _ = input1.shape
    _, L2, _ = input2.shape
    D1p, D2p, O = Wb.shape
    h1 = jnp.maximum(input1 @ W1.T + b1, 0.0)       # dropout = identity
    h2 = jnp.maximum(input2 @ W2.T + b2, 0.0)
    x1a = jnp.concatenate([h1, jnp.ones((N, L1, 1), h1.dtype)], axis=-1)
    x2a = jnp.concatenate([h2, jnp.ones((N, L2, 1), h2.dtype)], axis=-1)
    inter = x1a.reshape(-1, D1p) @ Wb.reshape(D1p, D2p * O)            # (N*L1, D2p*O)
    out = jnp.einsum('nak,nkj->naj',
                     inter.reshape(N, L1 * O, D2p),
                     jnp.transpose(x2a, (0, 2, 1)))                    # (N, L1*O, L2)
    out = jnp.transpose(out.reshape(N, L1, O, L2), (0, 1, 3, 2))       # (N, L1, L2, O)
    return out


if __name__ == "__main__":
    key = jax.random.PRNGKey(0)
    ks = jax.random.split(key, 8)

    N, L1, L2 = 2, 8, 16
    input1_size, input2_size, hidden_size, output_size = 24, 40, 32, 4

    x1 = jax.random.normal(ks[0], (N, L1, input1_size), jnp.float32)
    x2 = jax.random.normal(ks[1], (N, L2, input2_size), jnp.float32)

    # Synthetic parameters (nn.init.normal_-style, no checkpoint).
    W1 = jax.random.normal(ks[2], (hidden_size, input1_size), jnp.float32)   # nn.Linear W1
    b1 = jax.random.normal(ks[3], (hidden_size,), jnp.float32)
    W2 = jax.random.normal(ks[4], (hidden_size, input2_size), jnp.float32)   # nn.Linear W2
    b2 = jax.random.normal(ks[5], (hidden_size,), jnp.float32)
    Wb = jax.random.normal(ks[6], (hidden_size + 1, hidden_size + 1, output_size), jnp.float32)
    bb = jax.random.normal(ks[7], (output_size,), jnp.float32)  # PairwiseBilinear.bias: unused in forward
    # TODO(synk): training-mode dropout is not implemented (module default dropout=0 / eval).

    params = prepare_params(W1, b1, W2, b2, Wb)   # one-time param re-layout

    out = deep_biaffine_scorer(x1, x2, params)
    out = jax.block_until_ready(out)

    ref = torch_semantics_ref(x1, x2, W1, b1, W2, b2, Wb)
    assert out.shape == (N, L1, L2, output_size)
    rel_err = float(jnp.max(jnp.abs(out - ref)) / (jnp.max(jnp.abs(ref)) + 1e-6))
    assert rel_err < 2e-3, rel_err

    print("KERNEL_OK")
</pallas_src>

<mosaic_0001>
module attributes {stable_mosaic.version = 11 : i64} {
  func.func @deep_biaffine_kernel(%arg0: i32, %arg1: memref<1x8x24xf32, #tpu.memory_space<vmem>>, %arg2: memref<1x40x16xf32, #tpu.memory_space<vmem>>, %arg3: memref<24x32xf32, #tpu.memory_space<vmem>>, %arg4: memref<1x32xf32, #tpu.memory_space<vmem>>, %arg5: memref<128x40xf32, #tpu.memory_space<vmem>>, %arg6: memref<128x1xf32, #tpu.memory_space<vmem>>, %arg7: memref<32x512xf32, #tpu.memory_space<vmem>>, %arg8: memref<1x512xf32, #tpu.memory_space<vmem>>, %arg9: memref<1x4x8x16xf32, #tpu.memory_space<vmem>>) attributes {dimension_semantics = [#tpu.dimension_semantics<parallel>], iteration_bounds = array<i64: 2>, scalar_prefetch = 0 : i64, scratch_operands = 0 : i64, tpu.core_type = #tpu.core_type<tc>, window_params = [{transform_indices = @transform_0, window_bounds = array<i64: 1, 8, 24>}, {transform_indices = @transform_1, window_bounds = array<i64: 1, 40, 16>}, {pipeline_mode = #tpu.pipeline_mode<synchronous>, transform_indices = @transform_2, window_bounds = array<i64: 24, 32>}, {pipeline_mode = #tpu.pipeline_mode<synchronous>, transform_indices = @transform_3, window_bounds = array<i64: 1, 32>}, {pipeline_mode = #tpu.pipeline_mode<synchronous>, transform_indices = @transform_4, window_bounds = array<i64: 128, 40>}, {pipeline_mode = #tpu.pipeline_mode<synchronous>, transform_indices = @transform_5, window_bounds = array<i64: 128, 1>}, {pipeline_mode = #tpu.pipeline_mode<synchronous>, transform_indices = @transform_6, window_bounds = array<i64: 32, 512>}, {pipeline_mode = #tpu.pipeline_mode<synchronous>, transform_indices = @transform_7, window_bounds = array<i64: 1, 512>}, {transform_indices = @transform_8, window_bounds = array<i64: 1, 4, 8, 16>}]} {
    %c0 = arith.constant 0 : index
    %c0_0 = arith.constant 0 : index
    %c0_1 = arith.constant 0 : index
    %0 = vector.load %arg1[%c0, %c0_0, %c0_1] : memref<1x8x24xf32, #tpu.memory_space<vmem>>, vector<1x8x24xf32>
    %1 = vector.shape_cast %0 : vector<1x8x24xf32> to vector<8x24xf32>
    %c0_2 = arith.constant 0 : index
    %c0_3 = arith.constant 0 : index
    %2 = vector.load %arg3[%c0_2, %c0_3] : memref<24x32xf32, #tpu.memory_space<vmem>>, vector<24x32xf32>
    %cst = arith.constant dense<0.000000e+00> : vector<8x32xf32>
    %3 = tpu.matmul %1, %2, %cst {dimension_numbers = #tpu.dot_dimension_numbers<[1], [0], [0], [1], [0, 0, 1, 1], [], []>} : vector<8x24xf32>, vector<24x32xf32>, vector<8x32xf32> -> vector<8x32xf32>
    %c0_4 = arith.constant 0 : index
    %c0_5 = arith.constant 0 : index
    %4 = vector.load %arg4[%c0_4, %c0_5] : memref<1x32xf32, #tpu.memory_space<vmem>>, vector<1x32xf32>
    %5 = vector.broadcast %4 : vector<1x32xf32> to vector<8x32xf32>
    %6 = arith.addf %3, %5 : vector<8x32xf32>
    %cst_6 = arith.constant 0.000000e+00 : f32
    %7 = vector.broadcast %cst_6 : f32 to vector<8x32xf32>
    %8 = arith.maximumf %6, %7 : vector<8x32xf32>
    %c0_7 = arith.constant 0 : index
    %c0_8 = arith.constant 0 : index
    %9 = vector.load %arg5[%c0_7, %c0_8] : memref<128x40xf32, #tpu.memory_space<vmem>>, vector<128x40xf32>
    %c0_9 = arith.constant 0 : index
    %c0_10 = arith.constant 0 : index
    %c0_11 = arith.constant 0 : index
    %10 = vector.load %arg2[%c0_9, %c0_10, %c0_11] : memref<1x40x16xf32, #tpu.memory_space<vmem>>, vector<1x40x16xf32>
    %11 = vector.shape_cast %10 : vector<1x40x16xf32> to vector<40x16xf32>
    %cst_12 = arith.constant dense<0.000000e+00> : vector<128x16xf32>
    %12 = tpu.matmul %9, %11, %cst_12 {dimension_numbers = #tpu.dot_dimension_numbers<[1], [0], [0], [1], [0, 0, 1, 1], [], []>} : vector<128x40xf32>, vector<40x16xf32>, vector<128x16xf32> -> vector<128x16xf32>
    %c0_13 = arith.constant 0 : index
    %c0_14 = arith.constant 0 : index
    %13 = vector.load %arg6[%c0_13, %c0_14] : memref<128x1xf32, #tpu.memory_space<vmem>>, vector<128x1xf32>
    %14 = vector.broadcast %13 : vector<128x1xf32> to vector<128x16xf32>
    %15 = arith.addf %12, %14 : vector<128x16xf32>
    %cst_15 = arith.constant 0.000000e+00 : f32
    %16 = vector.broadcast %cst_15 : f32 to vector<128x16xf32>
    %17 = arith.maximumf %15, %16 : vector<128x16xf32>
    %c0_16 = arith.constant 0 : index
    %c0_17 = arith.constant 0 : index
    %18 = vector.load %arg7[%c0_16, %c0_17] : memref<32x512xf32, #tpu.memory_space<vmem>>, vector<32x512xf32>
    %cst_18 = arith.constant dense<0.000000e+00> : vector<8x512xf32>
    %19 = tpu.matmul %8, %18, %cst_18 {dimension_numbers = #tpu.dot_dimension_numbers<[1], [0], [0], [1], [0, 0, 1, 1], [], []>} : vector<8x32xf32>, vector<32x512xf32>, vector<8x512xf32> -> vector<8x512xf32>
    %c0_19 = arith.constant 0 : index
    %c0_20 = arith.constant 0 : index
    %20 = vector.load %arg8[%c0_19, %c0_20] : memref<1x512xf32, #tpu.memory_space<vmem>>, vector<1x512xf32>
    %21 = vector.broadcast %20 : vector<1x512xf32> to vector<8x512xf32>
    %22 = arith.addf %19, %21 : vector<8x512xf32>
    %23 = vector.extract_strided_slice %22 {offsets = [0, 0], sizes = [8, 128], strides = [1, 1]} : vector<8x512xf32> to vector<8x128xf32>
    %cst_21 = arith.constant dense<0.000000e+00> : vector<8x16xf32>
    %24 = tpu.matmul %23, %17, %cst_21 {dimension_numbers = #tpu.dot_dimension_numbers<[1], [0], [0], [1], [0, 0, 1, 1], [], []>} : vector<8x128xf32>, vector<128x16xf32>, vector<8x16xf32> -> vector<8x16xf32>
    %c0_22 = arith.constant 0 : index
    %c0_23 = arith.constant 0 : index
    %c0_24 = arith.constant 0 : index
    %c0_25 = arith.constant 0 : index
    %25 = vector.load %arg9[%c0_22, %c0_23, %c0_24, %c0_25] : memref<1x4x8x16xf32, #tpu.memory_space<vmem>>, vector<1x1x8x16xf32>
    %26 = vector.shape_cast %25 : vector<1x1x8x16xf32> to vector<8x16xf32>
    %27 = vector.shape_cast %24 : vector<8x16xf32> to vector<1x1x8x16xf32>
    tpu.vector_store %arg9[%c0_22, %c0_23, %c0_24, %c0_25], %27 {strides = array<i32>} : memref<1x4x8x16xf32, #tpu.memory_space<vmem>>, vector<1x1x8x16xf32>,
    %28 = vector.extract_strided_slice %22 {offsets = [0, 128], sizes = [8, 128], strides = [1, 1]} : vector<8x512xf32> to vector<8x128xf32>
    %cst_26 = arith.constant dense<0.000000e+00> : vector<8x16xf32>
    %29 = tpu.matmul %28, %17, %cst_26 {dimension_numbers = #tpu.dot_dimension_numbers<[1], [0], [0], [1], [0, 0, 1, 1], [], []>} : vector<8x128xf32>, vector<128x16xf32>, vector<8x16xf32> -> vector<8x16xf32>
    %c0_27 = arith.constant 0 : index
    %c1 = arith.constant 1 : index
    %c0_28 = arith.constant 0 : index
    %c0_29 = arith.constant 0 : index
    %30 = vector.load %arg9[%c0_27, %c1, %c0_28, %c0_29] : memref<1x4x8x16xf32, #tpu.memory_space<vmem>>, vector<1x1x8x16xf32>
    %31 = vector.shape_cast %30 : vector<1x1x8x16xf32> to vector<8x16xf32>
    %32 = vector.shape_cast %29 : vector<8x16xf32> to vector<1x1x8x16xf32>
    tpu.vector_store %arg9[%c0_27, %c1, %c0_28, %c0_29], %32 {strides = array<i32>} : memref<1x4x8x16xf32, #tpu.memory_space<vmem>>, vector<1x1x8x16xf32>,
    %33 = vector.extract_strided_slice %22 {offsets = [0, 256], sizes = [8, 128], strides = [1, 1]} : vector<8x512xf32> to vector<8x128xf32>
    %cst_30 = arith.constant dense<0.000000e+00> : vector<8x16xf32>
    %34 = tpu.matmul %33, %17, %cst_30 {dimension_numbers = #tpu.dot_dimension_numbers<[1], [0], [0], [1], [0, 0, 1, 1], [], []>} : vector<8x128xf32>, vector<128x16xf32>, vector<8x16xf32> -> vector<8x16xf32>
    %c0_31 = arith.constant 0 : index
    %c2 = arith.constant 2 : index
    %c0_32 = arith.constant 0 : index
    %c0_33 = arith.constant 0 : index
    %35 = vector.load %arg9[%c0_31, %c2, %c0_32, %c0_33] : memref<1x4x8x16xf32, #tpu.memory_space<vmem>>, vector<1x1x8x16xf32>
    %36 = vector.shape_cast %35 : vector<1x1x8x16xf32> to vector<8x16xf32>
    %37 = vector.shape_cast %34 : vector<8x16xf32> to vector<1x1x8x16xf32>
    tpu.vector_store %arg9[%c0_31, %c2, %c0_32, %c0_33], %37 {strides = array<i32>} : memref<1x4x8x16xf32, #tpu.memory_space<vmem>>, vector<1x1x8x16xf32>,
    %38 = vector.extract_strided_slice %22 {offsets = [0, 384], sizes = [8, 128], strides = [1, 1]} : vector<8x512xf32> to vector<8x128xf32>
    %cst_34 = arith.constant dense<0.000000e+00> : vector<8x16xf32>
    %39 = tpu.matmul %38, %17, %cst_34 {dimension_numbers = #tpu.dot_dimension_numbers<[1], [0], [0], [1], [0, 0, 1, 1], [], []>} : vector<8x128xf32>, vector<128x16xf32>, vector<8x16xf32> -> vector<8x16xf32>
    %c0_35 = arith.constant 0 : index
    %c3 = arith.constant 3 : index
    %c0_36 = arith.constant 0 : index
    %c0_37 = arith.constant 0 : index
    %40 = vector.load %arg9[%c0_35, %c3, %c0_36, %c0_37] : memref<1x4x8x16xf32, #tpu.memory_space<vmem>>, vector<1x1x8x16xf32>
    %41 = vector.shape_cast %40 : vector<1x1x8x16xf32> to vector<8x16xf32>
    %42 = vector.shape_cast %39 : vector<8x16xf32> to vector<1x1x8x16xf32>
    tpu.vector_store %arg9[%c0_35, %c3, %c0_36, %c0_37], %42 {strides = array<i32>} : memref<1x4x8x16xf32, #tpu.memory_space<vmem>>, vector<1x1x8x16xf32>,
    return
  }
  func.func @transform_0(%arg0: i32) -> (i32, i32, i32) {
    %c0_i32 = arith.constant 0 : i32
    %c0_i32_0 = arith.constant 0 : i32
    %c0_i32_1 = arith.constant 0 : i32
    return %arg0, %c0_i32, %c0_i32_0 : i32, i32, i32
  }
  func.func @transform_1(%arg0: i32) -> (i32, i32, i32) {
    %c0_i32 = arith.constant 0 : i32
    %c0_i32_0 = arith.constant 0 : i32
    %c0_i32_1 = arith.constant 0 : i32
    return %arg0, %c0_i32, %c0_i32_0 : i32, i32, i32
  }
  func.func @transform_2(%arg0: i32) -> (i32, i32) {
    %c0_i32 = arith.constant 0 : i32
    %c0_i32_0 = arith.constant 0 : i32
    %c0_i32_1 = arith.constant 0 : i32
    return %c0_i32, %c0_i32_0 : i32, i32
  }
  func.func @transform_3(%arg0: i32) -> (i32, i32) {
    %c0_i32 = arith.constant 0 : i32
    %c0_i32_0 = arith.constant 0 : i32
    %c0_i32_1 = arith.constant 0 : i32
    return %c0_i32, %c0_i32_0 : i32, i32
  }
  func.func @transform_4(%arg0: i32) -> (i32, i32) {
    %c0_i32 = arith.constant 0 : i32
    %c0_i32_0 = arith.constant 0 : i32
    %c0_i32_1 = arith.constant 0 : i32
    return %c0_i32, %c0_i32_0 : i32, i32
  }
  func.func @transform_5(%arg0: i32) -> (i32, i32) {
    %c0_i32 = arith.constant 0 : i32
    %c0_i32_0 = arith.constant 0 : i32
    %c0_i32_1 = arith.constant 0 : i32
    return %c0_i32, %c0_i32_0 : i32, i32
  }
  func.func @transform_6(%arg0: i32) -> (i32, i32) {
    %c0_i32 = arith.constant 0 : i32
    %c0_i32_0 = arith.constant 0 : i32
    %c0_i32_1 = arith.constant 0 : i32
    return %c0_i32, %c0_i32_0 : i32, i32
  }
  func.func @transform_7(%arg0: i32) -> (i32, i32) {
    %c0_i32 = arith.constant 0 : i32
    %c0_i32_0 = arith.constant 0 : i32
    %c0_i32_1 = arith.constant 0 : i32
    return %c0_i32, %c0_i32_0 : i32, i32
  }
  func.func @transform_8(%arg0: i32) -> (i32, i32, i32, i32) {
    %c0_i32 = arith.constant 0 : i32
    %c0_i32_0 = arith.constant 0 : i32
    %c0_i32_1 = arith.constant 0 : i32
    %c0_i32_2 = arith.constant 0 : i32
    return %arg0, %c0_i32, %c0_i32_0, %c0_i32_1 : i32, i32, i32, i32
  }
}

</mosaic_0001>

<llo_original>
// kernel: tpu_custom_call.1
$region0: #{tpu_custom_call.1}
  #allocation0 [shape = 'u32[]', space=smem, size = 0x4, offset = 0x4, fixed_abs, tag = 'smem constant byte address 0x4 - core index']
  #allocation1 [shape = 'u32[144,128]{1,0:T(1,128)}', space=vmem, size = 0x12000, scoped, tag = 'internal scratch']
  %s0 = inlined_call_operand.vmem [shape: f32[2,8,24], index: 0, kind: input, shape index: {}]
  %s1 = inlined_call_operand.vmem [shape: f32[2,40,16], index: 1, kind: input, shape index: {}]
  %s2 = inlined_call_operand.vmem [shape: f32[24,32], index: 2, kind: input, shape index: {}]
  %s3 = inlined_call_operand.vmem [shape: f32[1,32], index: 3, kind: input, shape index: {}]
  %s4 = inlined_call_operand.vmem [shape: f32[128,40], index: 4, kind: input, shape index: {}]
  %s5 = inlined_call_operand.vmem [shape: f32[128,1], index: 5, kind: input, shape index: {}]
  %s6 = inlined_call_operand.vmem [shape: f32[32,512], index: 6, kind: input, shape index: {}]
  %s7 = inlined_call_operand.vmem [shape: f32[1,512], index: 7, kind: input, shape index: {}]
  %s8 = inlined_call_operand.hbm [shape: f32[2,4,8,16], index: 8, kind: output, shape index: {}]
  %s9 = sld [smem:[#allocation0]]
  $region65: #{tpu_custom_call.1} parent=0
    _
  %s11 = ssub.s32 1, %s9
  %s12 = scalar_select 0, %s11, %s9
  $region1: #{tpu_custom_call.1} parent=0
    #allocation2 [shape = 'u8[32768]{0}', space=vmem, size = 0x8000, scoped, tag = 'output window, operand 0']
    #allocation3 [shape = 's32[2]{0}', space=sflag, size = 0x8, scoped, tag = 'scoped memory for tpu_custom_call.1']
    %13 = vsyncpa [#allocation3], 0
    %s14 = scalar_lea.sflag [#allocation3], 1
    %15 = vsyncpa %s14, 0
    loop: start=0, step=1, limit=4
    $region2: #{tpu_custom_call.1} parent=1 // loop_pre_header
      _
    $region3: #{tpu_custom_call.1} parent=1 // loop_header
      %s17 = sphi 0, %s21
      %p18 = scmp.ge.s32.totalorder %s17, 4
      %s27 = sphi 0, %s29
      %s30 = sphi 0, %s27
      %s31 = sphi 0, %s30
      %s47 = sphi 0, %s31
      %s53 = sphi 0, %s55
      %s56 = sphi 0, %s53
      %s57 = sphi 0, %s56
      %s73 = sphi 0, %s57
      %s77 = sphi 0, %s77
      %s79 = sphi 0, %s77
      %s80 = sphi 0, %s79
      %s94 = sphi 0, %s80
      %s98 = sphi 0, %s98
      %s100 = sphi 0, %s98
      %s101 = sphi 0, %s100
      %s115 = sphi 0, %s101
      %s119 = sphi 0, %s119
      %s121 = sphi 0, %s119
      %s122 = sphi 0, %s121
      %s136 = sphi 0, %s122
      %s140 = sphi 0, %s140
      %s142 = sphi 0, %s140
      %s143 = sphi 0, %s142
      %s157 = sphi 0, %s143
      %s161 = sphi 0, %s161
      %s163 = sphi 0, %s161
      %s164 = sphi 0, %s163
      %s178 = sphi 0, %s164
      %s182 = sphi 0, %s182
      %s184 = sphi 0, %s182
      %s185 = sphi 0, %s184
      %s199 = sphi 0, %s185
      %s205 = sphi 0, %s207
      %s208 = sphi 0, %s205
      %s209 = sphi 0, %s208
      %s225 = sphi 0, %s209
    $region4: #{tpu_custom_call.1} parent=1 // loop_header_branch
      %20 = sbr.rel (%p18) target = $region8
    $region5: #{tpu_custom_call.1} parent=1 // loop_body
      %s22 = ssub.s32 %s17, 1
      %s23 = ssub.s32 %s17, 2
      %s24 = sadd.s32 %s17, 1
      %s25 = ssub.s32 %s17, %s24
      %p26 = scmp.eq.s32.totalorder %s25, 0
      %s28 = sadd.s32 %s27, 1
      %s29 = scalar_select %p26, %s27, %s28
      %p32 = pneg %p26
      %p33 = scmp.eq.s32.totalorder %s17, 1
      %p34 = por %p32, %p33
      %p35 = scmp.ne.s32.totalorder %s27, %s30
      %p36 = scmp.eq.s32.totalorder %s17, 0
      %p37 = por %p35, %p36
      %p38 = scmp.ne.s32.totalorder %s27, %s30
      %p39 = scmp.eq.s32.totalorder %s22, 1
      %p40 = por %p38, %p39
      %p41 = scmp.ne.s32.totalorder %s30, %s31
      %p42 = scmp.eq.s32.totalorder %s22, 0
      %p43 = por %p41, %p42
      %p44 = scmp.ne.s32.totalorder %s30, %s31
      %p45 = scmp.eq.s32.totalorder %s23, 1
      %p46 = por %p44, %p45
      %p48 = scmp.ne.s32.totalorder %s31, %s47
      %p49 = scmp.eq.s32.totalorder %s23, 0
      %p50 = por %p48, %p49
      %s51 = ssub.s32 %s17, %s24
      %p52 = scmp.eq.s32.totalorder %s51, 0
      %s54 = sadd.s32 %s53, 1
      %s55 = scalar_select %p52, %s53, %s54
      %p58 = pneg %p52
      %p59 = scmp.eq.s32.totalorder %s17, 1
      %p60 = por %p58, %p59
      %p61 = scmp.ne.s32.totalorder %s53, %s56
      %p62 = scmp.eq.s32.totalorder %s17, 0
      %p63 = por %p61, %p62
      %p64 = scmp.ne.s32.totalorder %s53, %s56
      %p65 = scmp.eq.s32.totalorder %s22, 1
      %p66 = por %p64, %p65
      %p67 = scmp.ne.s32.totalorder %s56, %s57
      %p68 = scmp.eq.s32.totalorder %s22, 0
      %p69 = por %p67, %p68
      %p70 = scmp.ne.s32.totalorder %s56, %s57
      %p71 = scmp.eq.s32.totalorder %s23, 1
      %p72 = por %p70, %p71
      %p74 = scmp.ne.s32.totalorder %s57, %s73
      %p75 = scmp.eq.s32.totalorder %s23, 0
      %p76 = por %p74, %p75
      %s78 = sadd.s32 %s77, 1
      %p81 = scmp.eq.s32.totalorder %s17, 1
      %p82 = scmp.ne.s32.totalorder %s77, %s79
      %p83 = scmp.eq.s32.totalorder %s17, 0
      %p84 = por %p82, %p83
      %p85 = scmp.ne.s32.totalorder %s77, %s79
      %p86 = scmp.eq.s32.totalorder %s22, 1
      %p87 = por %p85, %p86
      %p88 = scmp.ne.s32.totalorder %s79, %s80
      %p89 = scmp.eq.s32.totalorder %s22, 0
      %p90 = por %p88, %p89
      %p91 = scmp.ne.s32.totalorder %s79, %s80
      %p92 = scmp.eq.s32.totalorder %s23, 1
      %p93 = por %p91, %p92
      %p95 = scmp.ne.s32.totalorder %s80, %s94
      %p96 = scmp.eq.s32.totalorder %s23, 0
      %p97 = por %p95, %p96
      %s99 = sadd.s32 %s98, 1
      %p102 = scmp.eq.s32.totalorder %s17, 1
      %p103 = scmp.ne.s32.totalorder %s98, %s100
      %p104 = scmp.eq.s32.totalorder %s17, 0
      %p105 = por %p103, %p104
      %p106 = scmp.ne.s32.totalorder %s98, %s100
      %p107 = scmp.eq.s32.totalorder %s22, 1
      %p108 = por %p106, %p107
      %p109 = scmp.ne.s32.totalorder %s100, %s101
      %p110 = scmp.eq.s32.totalorder %s22, 0
      %p111 = por %p109, %p110
      %p112 = scmp.ne.s32.totalorder %s100, %s101
      %p113 = scmp.eq.s32.totalorder %s23, 1
      %p114 = por %p112, %p113
      %p116 = scmp.ne.s32.totalorder %s101, %s115
      %p117 = scmp.eq.s32.totalorder %s23, 0
      %p118 = por %p116, %p117
      %s120 = sadd.s32 %s119, 1
      %p123 = scmp.eq.s32.totalorder %s17, 1
      %p124 = scmp.ne.s32.totalorder %s119, %s121
      %p125 = scmp.eq.s32.totalorder %s17, 0
      %p126 = por %p124, %p125
      %p127 = scmp.ne.s32.totalorder %s119, %s121
      %p128 = scmp.eq.s32.totalorder %s22, 1
      %p129 = por %p127, %p128
      %p130 = scmp.ne.s32.totalorder %s121, %s122
      %p131 = scmp.eq.s32.totalorder %s22, 0
      %p132 = por %p130, %p131
      %p133 = scmp.ne.s32.totalorder %s121, %s122
      %p134 = scmp.eq.s32.totalorder %s23, 1
      %p135 = por %p133, %p134
      %p137 = scmp.ne.s32.totalorder %s122, %s136
      %p138 = scmp.eq.s32.totalorder %s23, 0
      %p139 = por %p137, %p138
      %s141 = sadd.s32 %s140, 1
      %p144 = scmp.eq.s32.totalorder %s17, 1
      %p145 = scmp.ne.s32.totalorder %s140, %s142
      %p146 = scmp.eq.s32.totalorder %s17, 0
      %p147 = por %p145, %p146
      %p148 = scmp.ne.s32.totalorder %s140, %s142
      %p149 = scmp.eq.s32.totalorder %s22, 1
      %p150 = por %p148, %p149
      %p151 = scmp.ne.s32.totalorder %s142, %s143
      %p152 = scmp.eq.s32.totalorder %s22, 0
      %p153 = por %p151, %p152
      %p154 = scmp.ne.s32.totalorder %s142, %s143
      %p155 = scmp.eq.s32.totalorder %s23, 1
      %p156 = por %p154, %p155
      %p158 = scmp.ne.s32.totalorder %s143, %s157
      %p159 = scmp.eq.s32.totalorder %s23, 0
      %p160 = por %p158, %p159
      %s162 = sadd.s32 %s161, 1
      %p165 = scmp.eq.s32.totalorder %s17, 1
      %p166 = scmp.ne.s32.totalorder %s161, %s163
      %p167 = scmp.eq.s32.totalorder %s17, 0
      %p168 = por %p166, %p167
      %p169 = scmp.ne.s32.totalorder %s161, %s163
      %p170 = scmp.eq.s32.totalorder %s22, 1
      %p171 = por %p169, %p170
      %p172 = scmp.ne.s32.totalorder %s163, %s164
      %p173 = scmp.eq.s32.totalorder %s22, 0
      %p174 = por %p172, %p173
      %p175 = scmp.ne.s32.totalorder %s163, %s164
      %p176 = scmp.eq.s32.totalorder %s23, 1
      %p177 = por %p175, %p176
      %p179 = scmp.ne.s32.totalorder %s164, %s178
      %p180 = scmp.eq.s32.totalorder %s23, 0
      %p181 = por %p179, %p180
      %s183 = sadd.s32 %s182, 1
      %p186 = scmp.eq.s32.totalorder %s17, 1
      %p187 = scmp.ne.s32.totalorder %s182, %s184
      %p188 = scmp.eq.s32.totalorder %s17, 0
      %p189 = por %p187, %p188
      %p190 = scmp.ne.s32.totalorder %s182, %s184
      %p191 = scmp.eq.s32.totalorder %s22, 1
      %p192 = por %p190, %p191
      %p193 = scmp.ne.s32.totalorder %s184, %s185
      %p194 = scmp.eq.s32.totalorder %s22, 0
      %p195 = por %p193, %p194
      %p196 = scmp.ne.s32.totalorder %s184, %s185
      %p197 = scmp.eq.s32.totalorder %s23, 1
      %p198 = por %p196, %p197
      %p200 = scmp.ne.s32.totalorder %s185, %s199
      %p201 = scmp.eq.s32.totalorder %s23, 0
      %p202 = por %p200, %p201
      %s203 = ssub.s32 %s17, %s24
      %p204 = scmp.eq.s32.totalorder %s203, 0
      %s206 = sadd.s32 %s205, 1
      %s207 = scalar_select %p204, %s205, %s206
      %p210 = pneg %p204
      %p211 = scmp.eq.s32.totalorder %s17, 1
      %p212 = por %p210, %p211
      %p213 = scmp.ne.s32.totalorder %s205, %s208
      %p214 = scmp.eq.s32.totalorder %s17, 0
      %p215 = por %p213, %p214
      %p216 = scmp.ne.s32.totalorder %s205, %s208
      %p217 = scmp.eq.s32.totalorder %s22, 1
      %p218 = por %p216, %p217
      %p219 = scmp.ne.s32.totalorder %s208, %s209
      %p220 = scmp.eq.s32.totalorder %s22, 0
      %p221 = por %p219, %p220
      %p222 = scmp.ne.s32.totalorder %s208, %s209
      %p223 = scmp.eq.s32.totalorder %s23, 1
      %p224 = por %p222, %p223
      %p226 = scmp.ne.s32.totalorder %s209, %s225
      %p227 = scmp.eq.s32.totalorder %s23, 0
      %p228 = por %p226, %p227
      %p229 = scmp.le.s32.totalorder 1, %s17
      %p230 = scmp.lt.s32.totalorder %s17, 3
      %p231 = pnand %p229, %p230
      %p232 = pneg %p231
      // Predicated region
      $region9: #{tpu_custom_call.1} parent=5 // pred_check
        _
      $region10: #{tpu_custom_call.1} parent=5 // pred_check_branch
        %234 = sbr.rel (%p231) target = $region12
      $region11: #{tpu_custom_call.1} parent=5 // pred_region
        %s235 = ssub.s32 %s17, 1
        // Predicated region
        $region13: #{tpu_custom_call.1} parent=11 // pred_check
          %p236 = pneg %p90
        $region14: #{tpu_custom_call.1} parent=11 // pred_check_branch
          %238 = sbr.rel (%p236) target = $region16
        $region15: #{tpu_custom_call.1} parent=11 // pred_region
          _
        $region16: #{tpu_custom_call.1} parent=11 // pred_fallthru
          _
        // Predicated region
        $region17: #{tpu_custom_call.1} parent=11 // pred_check
          %p239 = pneg %p111
        $region18: #{tpu_custom_call.1} parent=11 // pred_check_branch
          %241 = sbr.rel (%p239) target = $region20
        $region19: #{tpu_custom_call.1} parent=11 // pred_region
          _
        $region20: #{tpu_custom_call.1} parent=11 // pred_fallthru
          _
        // Predicated region
        $region21: #{tpu_custom_call.1} parent=11 // pred_check
          %p242 = pneg %p132
        $region22: #{tpu_custom_call.1} parent=11 // pred_check_branch
          %244 = sbr.rel (%p242) target = $region24
        $region23: #{tpu_custom_call.1} parent=11 // pred_region
          _
        $region24: #{tpu_custom_call.1} parent=11 // pred_fallthru
          _
        // Predicated region
        $region25: #{tpu_custom_call.1} parent=11 // pred_check
          %p245 = pneg %p153
        $region26: #{tpu_custom_call.1} parent=11 // pred_check_branch
          %247 = sbr.rel (%p245) target = $region28
        $region27: #{tpu_custom_call.1} parent=11 // pred_region
          _
        $region28: #{tpu_custom_call.1} parent=11 // pred_fallthru
          _
        // Predicated region
        $region29: #{tpu_custom_call.1} parent=11 // pred_check
          %p248 = pneg %p174
        $region30: #{tpu_custom_call.1} parent=11 // pred_check_branch
          %250 = sbr.rel (%p248) target = $region32
        $region31: #{tpu_custom_call.1} parent=11 // pred_region
          _
        $region32: #{tpu_custom_call.1} parent=11 // pred_fallthru
          _
        // Predicated region
        $region33: #{tpu_custom_call.1} parent=11 // pred_check
          %p251 = pneg %p195
        $region34: #{tpu_custom_call.1} parent=11 // pred_check_branch
          %253 = sbr.rel (%p251) target = $region36
        $region35: #{tpu_custom_call.1} parent=11 // pred_region
          _
        $region36: #{tpu_custom_call.1} parent=11 // pred_fallthru
          _
      $region12: #{tpu_custom_call.1} parent=5 // pred_fallthru
        _
      %p254 = scmp.lt.s32.totalorder %s17, 2
      // Predicated region
      $region37: #{tpu_custom_call.1} parent=5 // pred_check
        %p255 = pneg %p254
      $region38: #{tpu_custom_call.1} parent=5 // pred_check_branch
        %257 = sbr.rel (%p255) target = $region40
      $region39: #{tpu_custom_call.1} parent=5 // pred_region
        // Predicated region
        $region41: #{tpu_custom_call.1} parent=39 // pred_check
          %p258 = pneg %p37
        $region42: #{tpu_custom_call.1} parent=39 // pred_check_branch
          %260 = sbr.rel (%p258) target = $region44
        $region43: #{tpu_custom_call.1} parent=39 // pred_region
          %p261 = scmp.lt.s32.totalorder %s17, 1
          %s262 = scalar_select %p261, %s17, 1
          %s263 = smul.addr %s262, 8
          %s264 = scalar_lea.vmem %s0, %s263
        $region44: #{tpu_custom_call.1} parent=39 // pred_fallthru
          _
        // Predicated region
        $region45: #{tpu_custom_call.1} parent=39 // pred_check
          %p265 = pneg %p63
        $region46: #{tpu_custom_call.1} parent=39 // pred_check_branch
          %267 = sbr.rel (%p265) target = $region48
        $region47: #{tpu_custom_call.1} parent=39 // pred_region
          %p268 = scmp.lt.s32.totalorder %s17, 1
          %s269 = scalar_select %p268, %s17, 1
          %s270 = smul.addr %s269, 5
          %s271 = smul.addr %s270, 8
          %s272 = scalar_lea.vmem %s1, %s271
        $region48: #{tpu_custom_call.1} parent=39 // pred_fallthru
          _
      $region40: #{tpu_custom_call.1} parent=5 // pred_fallthru
        _
      %p273 = scmp.le.s32.totalorder 1, %s17
      %p274 = scmp.lt.s32.totalorder %s17, 3
      %p275 = pnand %p273, %p274
      %p276 = pneg %p275
      // Predicated region
      $region49: #{tpu_custom_call.1} parent=5 // pred_check
        _
      $region50: #{tpu_custom_call.1} parent=5 // pred_check_branch
        %278 = sbr.rel (%p275) target = $region52
      $region51: #{tpu_custom_call.1} parent=5 // pred_region
        %s279 = ssub.s32 %s17, 1
        %p280 = scmp.lt.s32.totalorder %s22, 1
        %s281 = scalar_select %p280, %s22, 1
        %s282 = smul.addr %s281, 8
        %s283 = scalar_lea.vmem %s0, %s282
        %p284 = pneg %p43
        %p285 = pneg %p40
        %p286 = scmp.lt.s32.totalorder %s22, 1
        %s287 = scalar_select %p286, %s22, 1
        %s288 = smul.addr %s287, 5
        %s289 = smul.addr %s288, 8
        %s290 = scalar_lea.vmem %s1, %s289
        %p291 = pneg %p69
        %p292 = pneg %p66
        %p293 = pneg %p90
        %p294 = pneg %p87
        %p295 = pneg %p111
        %p296 = pneg %p108
        %p297 = pneg %p132
        %p298 = pneg %p129
        %p299 = pneg %p153
        %p300 = pneg %p150
        %p301 = pneg %p174
        %p302 = pneg %p171
        %p303 = pneg %p195
        %p304 = pneg %p192
        %p305 = pneg %p221
        %p306 = pneg %p218
        %s307 = sand.u32 %s208, 1
        %s308 = scalar_lea.sflag [#allocation3], %s307
        %s309 = sand.u32 %s208, 1
        %s310 = smul.addr %s309, 32
        %s311 = scalar_lea.vmem [#allocation2], %s310
        %p312 = scmp.lt.s32.totalorder %s22, 1
        %s313 = scalar_select %p312, %s22, 1
        %s314 = smul.addr %s313, 8
        %s315 = scalar_lea.vmem %s0, %s314
        %p316 = scmp.lt.s32.totalorder %s22, 1
        %s317 = scalar_select %p316, %s22, 1
        %s318 = smul.addr %s317, 5
        %s319 = smul.addr %s318, 8
        %s320 = scalar_lea.vmem %s1, %s319
        %v321 = vld [vmem:[%s315] sm:$0xff]
        %v322 = vld [vmem:[%s2] sm:$0xff]
        %v323 = vld [vmem:[%s2 + $0x8] sm:$0xff]
        %v324 = vld [vmem:[%s2 + $0x10] sm:$0xff]
        %v325 = vld [vmem:[%s3] sm:$0x1]
        %v327 = vlaneseq
        %v328 = vshrl.u32 %v327, 7
        %v329 = vsub.s32 0, %v328
        %v330 = vrot.slane %v325, %v329
        %vm332 = vcmask 195584
        %v334 = vsel %vm332, %v321, 0
        %336 = vmatprep.subr.mxu0 0.0
        %337 = vmatpush1.msra.mxu0 %v322
        %338 = vmatprep.subr.mxu0 0.0
        %339 = vmatpush1.msra.mxu0 %v323
        %340 = vmatprep.subr.mxu0 0.0
        %341 = vmatpush1.msra.mxu0 %v324
        %342 = vmatprep.subr.mxu0 0.0
        %343 = vmatpush1.msra.mxu0 0.0
        %344 = vmatprep.subr.mxu0 0.0
        %345 = vmatpush1.msra.mxu0 0.0
        %346 = vmatprep.subr.mxu0 0.0
        %347 = vmatpush1.msra.mxu0 0.0
        %348 = vmatprep.subr.mxu0 0.0
        %349 = vmatpush1.msra.mxu0 0.0
        %350 = vmatprep.subr.mxu0 0.0
        %351 = vmatpush1.msra.mxu0 0.0
        %352 = vmatprep.subr.mxu0 0.0
        %353 = vmatpush1.msra.mxu0 0.0
        %354 = vmatprep.subr.mxu0 0.0
        %355 = vmatpush1.msra.mxu0 0.0
        %356 = vmatprep.subr.mxu0 0.0
        %357 = vmatpush1.msra.mxu0 0.0
        %358 = vmatprep.subr.mxu0 0.0
        %359 = vmatpush1.msra.mxu0 0.0
        %360 = vmatprep.subr.mxu0 0.0
        %361 = vmatpush1.msra.mxu0 0.0
        %362 = vmatprep.subr.mxu0 0.0
        %363 = vmatpush1.msra.mxu0 0.0
        %364 = vmatprep.subr.mxu0 0.0
        %365 = vmatpush1.msra.mxu0 0.0
        %366 = vmatprep.subr.mxu0 0.0
        %367 = vmatpush1.msra.mxu0 0.0
        %368 = vmatprep.subr.mxu0 0.0
        %369 = vmatpush1.msra.mxu0 0.0
        %370 = vmatprep.subr.mxu0 0.0
        %371 = vmatpush1.msra.mxu0 0.0
        %372 = vmatprep.subr.mxu0 0.0
        %373 = vmatpush1.msra.mxu0 0.0
        %374 = vmatprep.subr.mxu0 0.0
        %375 = vmatpush1.msra.mxu0 0.0
        %376 = vmatprep.subr.mxu0 0.0
        %377 = vmatpush1.msra.mxu0 0.0
        %378 = vmatprep.subr.mxu0 0.0
        %379 = vmatpush1.msra.mxu0 0.0
        %380 = vmatprep.subr.mxu0 0.0
        %381 = vmatpush1.msra.mxu0 0.0
        %382 = vmatprep.subr.mxu0 0.0
        %383 = vmatpush1.msra.mxu0 0.0
        %384 = vmatprep.subr.mxu0 0.0
        %385 = vmatpush1.msra.mxu0 0.0
        %386 = vmatprep.subr.mxu0 0.0
        %387 = vmatpush1.msra.mxu0 0.0
        %388 = vmatprep.subr.mxu0 0.0
        %389 = vmatpush1.msra.mxu0 0.0
        %390 = vmatprep.subr.mxu0 0.0
        %391 = vmatpush1.msra.mxu0 0.0
        %392 = vmatprep.subr.mxu0 0.0
        %393 = vmatpush1.msra.mxu0 0.0
        %394 = vmatprep.subr.mxu0 0.0
        %395 = vmatpush1.msra.mxu0 0.0
        %396 = vmatprep.subr.mxu0 0.0
        %397 = vmatpush1.msra.mxu0 0.0
        %398 = vmatprep.subr.mxu0 0.0
        %399 = vmatpush1.msra.mxu0 0.0
        %400 = vmatprep.mubr.f32.mxu0 0.0
        %401 = vmatmul.mubr.f32.gmra.mrb[0].mxu0 %v334
        %v402 = vpop.f32.mrb[0].mxu0
        %v403 = vadd.f32 %v330, %v402
        %v404 = vpop.f32.mrb[0].mxu0
        %405 = vdwg.mxu0
        %v406 = vmax.f32 %v403, 0.0
        %v407 = vld [vmem:[%s4] sm:$0xff]
        %v408 = vld [vmem:[%s4 + $0x8] sm:$0xff]
        %v409 = vld [vmem:[%s4 + $0x10] sm:$0xff]
        %v410 = vld [vmem:[%s4 + $0x18] sm:$0xff]
        %v411 = vld [vmem:[%s4 + $0x20] sm:$0xff]
        %v412 = vld [vmem:[%s4 + $0x28] sm:$0xff]
        %v413 = vld [vmem:[%s4 + $0x30] sm:$0xff]
        %v414 = vld [vmem:[%s4 + $0x38] sm:$0xff]
        %v415 = vld [vmem:[%s4 + $0x40] sm:$0xff]
        %v416 = vld [vmem:[%s4 + $0x48] sm:$0xff]
        %v417 = vld [vmem:[%s4 + $0x50] sm:$0xff]
        %v418 = vld [vmem:[%s4 + $0x58] sm:$0xff]
        %v419 = vld [vmem:[%s4 + $0x60] sm:$0xff]
        %v420 = vld [vmem:[%s4 + $0x68] sm:$0xff]
        %v421 = vld [vmem:[%s4 + $0x70] sm:$0xff]
        %v422 = vld [vmem:[%s4 + $0x78] sm:$0xff]
        %v423 = vld [vmem:[%s320] sm:$0xff]
        %v424 = vld [vmem:[%s320 + $0x8] sm:$0xff]
        %v425 = vld [vmem:[%s320 + $0x10] sm:$0xff]
        %v426 = vld [vmem:[%s320 + $0x18] sm:$0xff]
        %v427 = vld [vmem:[%s320 + $0x20] sm:$0xff]
        %v428 = vld [vmem:[%s5] sm:$0xff]
        %v429 = vld [vmem:[%s5 + $0x8] sm:$0xff]
        %v430 = vld [vmem:[%s5 + $0x10] sm:$0xff]
        %v431 = vld [vmem:[%s5 + $0x18] sm:$0xff]
        %v432 = vld [vmem:[%s5 + $0x20] sm:$0xff]
        %v433 = vld [vmem:[%s5 + $0x28] sm:$0xff]
        %v434 = vld [vmem:[%s5 + $0x30] sm:$0xff]
        %v435 = vld [vmem:[%s5 + $0x38] sm:$0xff]
        %v436 = vld [vmem:[%s5 + $0x40] sm:$0xff]
        %v437 = vld [vmem:[%s5 + $0x48] sm:$0xff]
        %v438 = vld [vmem:[%s5 + $0x50] sm:$0xff]
        %v439 = vld [vmem:[%s5 + $0x58] sm:$0xff]
        %v440 = vld [vmem:[%s5 + $0x60] sm:$0xff]
        %v441 = vld [vmem:[%s5 + $0x68] sm:$0xff]
        %v442 = vld [vmem:[%s5 + $0x70] sm:$0xff]
        %v443 = vld [vmem:[%s5 + $0x78] sm:$0xff]
        %445 = vset.pattern.permute.xlu0 0
        %446 = vperm.xlu0 %445, %v428
        %v447 = vpop.permute.xlu0 %446
        %450 = vset.pattern.permute.xlu0 0
        %451 = vperm.xlu0 %450, %v429
        %v452 = vpop.permute.xlu0 %451
        %455 = vset.pattern.permute.xlu0 0
        %456 = vperm.xlu0 %455, %v430
        %v457 = vpop.permute.xlu0 %456
        %460 = vset.pattern.permute.xlu0 0
        %461 = vperm.xlu0 %460, %v431
        %v462 = vpop.permute.xlu0 %461
        %465 = vset.pattern.permute.xlu0 0
        %466 = vperm.xlu0 %465, %v432
        %v467 = vpop.permute.xlu0 %466
        %470 = vset.pattern.permute.xlu0 0
        %471 = vperm.xlu0 %470, %v433
        %v472 = vpop.permute.xlu0 %471
        %475 = vset.pattern.permute.xlu0 0
        %476 = vperm.xlu0 %475, %v434
        %v477 = vpop.permute.xlu0 %476
        %480 = vset.pattern.permute.xlu0 0
        %481 = vperm.xlu0 %480, %v435
        %v482 = vpop.permute.xlu0 %481
        %485 = vset.pattern.permute.xlu0 0
        %486 = vperm.xlu0 %485, %v436
        %v487 = vpop.permute.xlu0 %486
        %490 = vset.pattern.permute.xlu0 0
        %491 = vperm.xlu0 %490, %v437
        %v492 = vpop.permute.xlu0 %491
        %495 = vset.pattern.permute.xlu0 0
        %496 = vperm.xlu0 %495, %v438
        %v497 = vpop.permute.xlu0 %496
        %500 = vset.pattern.permute.xlu0 0
        %501 = vperm.xlu0 %500, %v439
        %v502 = vpop.permute.xlu0 %501
        %505 = vset.pattern.permute.xlu0 0
        %506 = vperm.xlu0 %505, %v440
        %v507 = vpop.permute.xlu0 %506
        %510 = vset.pattern.permute.xlu0 0
        %511 = vperm.xlu0 %510, %v441
        %v512 = vpop.permute.xlu0 %511
        %515 = vset.pattern.permute.xlu0 0
        %516 = vperm.xlu0 %515, %v442
        %v517 = vpop.permute.xlu0 %516
        %520 = vset.pattern.permute.xlu0 0
        %521 = vperm.xlu0 %520, %v443
        %v522 = vpop.permute.xlu0 %521
        %vm524 = vcmask 326656
        %v526 = vsel %vm524, %v407, 0
        %v529 = vsel %vm524, %v408, 0
        %v532 = vsel %vm524, %v409, 0
        %v535 = vsel %vm524, %v410, 0
        %v538 = vsel %vm524, %v411, 0
        %v541 = vsel %vm524, %v412, 0
        %v544 = vsel %vm524, %v413, 0
        %v547 = vsel %vm524, %v414, 0
        %v550 = vsel %vm524, %v415, 0
        %v553 = vsel %vm524, %v416, 0
        %v556 = vsel %vm524, %v417, 0
        %v559 = vsel %vm524, %v418, 0
        %v562 = vsel %vm524, %v419, 0
        %v565 = vsel %vm524, %v420, 0
        %v568 = vsel %vm524, %v421, 0
        %v571 = vsel %vm524, %v422, 0
        %573 = vmatprep.subr.mxu0 0.0
        %574 = vmatpush1.msra.mxu0 %v423
        %575 = vmatprep.subr.mxu0 0.0
        %576 = vmatpush1.msra.mxu0 %v424
        %577 = vmatprep.subr.mxu0 0.0
        %578 = vmatpush1.msra.mxu0 %v425
        %579 = vmatprep.subr.mxu0 0.0
        %580 = vmatpush1.msra.mxu0 %v426
        %581 = vmatprep.subr.mxu0 0.0
        %582 = vmatpush1.msra.mxu0 %v427
        %583 = vmatprep.subr.mxu0 0.0
        %584 = vmatpush1.msra.mxu0 0.0
        %585 = vmatprep.subr.mxu0 0.0
        %586 = vmatpush1.msra.mxu0 0.0
        %587 = vmatprep.subr.mxu0 0.0
        %588 = vmatpush1.msra.mxu0 0.0
        %589 = vmatprep.subr.mxu0 0.0
        %590 = vmatpush1.msra.mxu0 0.0
        %591 = vmatprep.subr.mxu0 0.0
        %592 = vmatpush1.msra.mxu0 0.0
        %593 = vmatprep.subr.mxu0 0.0
        %594 = vmatpush1.msra.mxu0 0.0
        %595 = vmatprep.subr.mxu0 0.0
        %596 = vmatpush1.msra.mxu0 0.0
        %597 = vmatprep.subr.mxu0 0.0
        %598 = vmatpush1.msra.mxu0 0.0
        %599 = vmatprep.subr.mxu0 0.0
        %600 = vmatpush1.msra.mxu0 0.0
        %601 = vmatprep.subr.mxu0 0.0
        %602 = vmatpush1.msra.mxu0 0.0
        %603 = vmatprep.subr.mxu0 0.0
        %604 = vmatpush1.msra.mxu0 0.0
        %605 = vmatprep.subr.mxu0 0.0
        %606 = vmatpush1.msra.mxu0 0.0
        %607 = vmatprep.subr.mxu0 0.0
        %608 = vmatpush1.msra.mxu0 0.0
        %609 = vmatprep.subr.mxu0 0.0
        %610 = vmatpush1.msra.mxu0 0.0
        %611 = vmatprep.subr.mxu0 0.0
        %612 = vmatpush1.msra.mxu0 0.0
        %613 = vmatprep.subr.mxu0 0.0
        %614 = vmatpush1.msra.mxu0 0.0
        %615 = vmatprep.subr.mxu0 0.0
        %616 = vmatpush1.msra.mxu0 0.0
        %617 = vmatprep.subr.mxu0 0.0
        %618 = vmatpush1.msra.mxu0 0.0
        %619 = vmatprep.subr.mxu0 0.0
        %620 = vmatpush1.msra.mxu0 0.0
        %621 = vmatprep.subr.mxu0 0.0
        %622 = vmatpush1.msra.mxu0 0.0
        %623 = vmatprep.subr.mxu0 0.0
        %624 = vmatpush1.msra.mxu0 0.0
        %625 = vmatprep.subr.mxu0 0.0
        %626 = vmatpush1.msra.mxu0 0.0
        %627 = vmatprep.subr.mxu0 0.0
        %628 = vmatpush1.msra.mxu0 0.0
        %629 = vmatprep.subr.mxu0 0.0
        %630 = vmatpush1.msra.mxu0 0.0
        %631 = vmatprep.subr.mxu0 0.0
        %632 = vmatpush1.msra.mxu0 0.0
        %633 = vmatprep.subr.mxu0 0.0
        %634 = vmatpush1.msra.mxu0 0.0
        %635 = vmatprep.subr.mxu0 0.0
        %636 = vmatpush1.msra.mxu0 0.0
        %637 = vmatprep.mubr.f32.mxu0 0.0
        %638 = vmatmul.mubr.f32.gmra.mrb[0].mxu0 %v526
        %v639 = vpop.f32.mrb[0].mxu0
        %v640 = vadd.f32 %v447, %v639
        %v641 = vpop.f32.mrb[0].mxu0
        %642 = vmatprep.mubr.f32.mxu0 0.0
        %643 = vmatmul.mubr.f32.gmra.mrb[0].mxu0 %v529
        %v644 = vpop.f32.mrb[0].mxu0
        %v645 = vadd.f32 %v452, %v644
        %v646 = vpop.f32.mrb[0].mxu0
        %647 = vmatprep.mubr.f32.mxu0 0.0
        %648 = vmatmul.mubr.f32.gmra.mrb[0].mxu0 %v532
        %v649 = vpop.f32.mrb[0].mxu0
        %v650 = vadd.f32 %v457, %v649
        %v651 = vpop.f32.mrb[0].mxu0
        %652 = vmatprep.mubr.f32.mxu0 0.0
        %653 = vmatmul.mubr.f32.gmra.mrb[0].mxu0 %v535
        %v654 = vpop.f32.mrb[0].mxu0
        %v655 = vadd.f32 %v462, %v654
        %v656 = vpop.f32.mrb[0].mxu0
        %657 = vmatprep.mubr.f32.mxu0 0.0
        %658 = vmatmul.mubr.f32.gmra.mrb[0].mxu0 %v538
        %v659 = vpop.f32.mrb[0].mxu0
        %v660 = vadd.f32 %v467, %v659
        %v661 = vpop.f32.mrb[0].mxu0
        %662 = vmatprep.mubr.f32.mxu0 0.0
        %663 = vmatmul.mubr.f32.gmra.mrb[0].mxu0 %v541
        %v664 = vpop.f32.mrb[0].mxu0
        %v665 = vadd.f32 %v472, %v664
        %v666 = vpop.f32.mrb[0].mxu0
        %667 = vmatprep.mubr.f32.mxu0 0.0
        %668 = vmatmul.mubr.f32.gmra.mrb[0].mxu0 %v544
        %v669 = vpop.f32.mrb[0].mxu0
        %v670 = vadd.f32 %v477, %v669
        %v671 = vpop.f32.mrb[0].mxu0
        %672 = vmatprep.mubr.f32.mxu0 0.0
        %673 = vmatmul.mubr.f32.gmra.mrb[0].mxu0 %v547
        %v674 = vpop.f32.mrb[0].mxu0
        %v675 = vadd.f32 %v482, %v674
        %v676 = vpop.f32.mrb[0].mxu0
        %677 = vmatprep.mubr.f32.mxu0 0.0
        %678 = vmatmul.mubr.f32.gmra.mrb[0].mxu0 %v550
        %v679 = vpop.f32.mrb[0].mxu0
        %v680 = vadd.f32 %v487, %v679
        %v681 = vpop.f32.mrb[0].mxu0
        %682 = vmatprep.mubr.f32.mxu0 0.0
        %683 = vmatmul.mubr.f32.gmra.mrb[0].mxu0 %v553
        %v684 = vpop.f32.mrb[0].mxu0
        %v685 = vadd.f32 %v492, %v684
        %v686 = vpop.f32.mrb[0].mxu0
        %687 = vmatprep.mubr.f32.mxu0 0.0
        %688 = vmatmul.mubr.f32.gmra.mrb[0].mxu0 %v556
        %v689 = vpop.f32.mrb[0].mxu0
        %v690 = vadd.f32 %v497, %v689
        %v691 = vpop.f32.mrb[0].mxu0
        %692 = vmatprep.mubr.f32.mxu0 0.0
        %693 = vmatmul.mubr.f32.gmra.mrb[0].mxu0 %v559
        %v694 = vpop.f32.mrb[0].mxu0
        %v695 = vadd.f32 %v502, %v694
        %v696 = vpop.f32.mrb[0].mxu0
        %697 = vmatprep.mubr.f32.mxu0 0.0
        %698 = vmatmul.mubr.f32.gmra.mrb[0].mxu0 %v562
        %v699 = vpop.f32.mrb[0].mxu0
        %v700 = vadd.f32 %v507, %v699
        %v701 = vpop.f32.mrb[0].mxu0
        %702 = vmatprep.mubr.f32.mxu0 0.0
        %703 = vmatmul.mubr.f32.gmra.mrb[0].mxu0 %v565
        %v704 = vpop.f32.mrb[0].mxu0
        %v705 = vadd.f32 %v512, %v704
        %v706 = vpop.f32.mrb[0].mxu0
        %707 = vmatprep.mubr.f32.mxu0 0.0
        %708 = vmatmul.mubr.f32.gmra.mrb[0].mxu0 %v568
        %v709 = vpop.f32.mrb[0].mxu0
        %v710 = vadd.f32 %v517, %v709
        %v711 = vpop.f32.mrb[0].mxu0
        %712 = vmatprep.mubr.f32.mxu0 0.0
        %713 = vmatmul.mubr.f32.gmra.mrb[0].mxu0 %v571
        %v714 = vpop.f32.mrb[0].mxu0
        %v715 = vadd.f32 %v522, %v714
        %v716 = vpop.f32.mrb[0].mxu0
        %717 = vdwg.mxu0
        %v718 = vmax.f32 %v640, 0.0
        %v719 = vmax.f32 %v645, 0.0
        %v720 = vmax.f32 %v650, 0.0
        %v721 = vmax.f32 %v655, 0.0
        %v722 = vmax.f32 %v660, 0.0
        %v723 = vmax.f32 %v665, 0.0
        %v724 = vmax.f32 %v670, 0.0
        %v725 = vmax.f32 %v675, 0.0
        %v726 = vmax.f32 %v680, 0.0
        %v727 = vmax.f32 %v685, 0.0
        %v728 = vmax.f32 %v690, 0.0
        %v729 = vmax.f32 %v695, 0.0
        %v730 = vmax.f32 %v700, 0.0
        %v731 = vmax.f32 %v705, 0.0
        %v732 = vmax.f32 %v710, 0.0
        %v733 = vmax.f32 %v715, 0.0
        %v734 = vld [vmem:[%s6] sm:$0xff]
        %v735 = vld [vmem:[%s6 + $0x8] sm:$0xff]
        %v736 = vld [vmem:[%s6 + $0x10] sm:$0xff]
        %v737 = vld [vmem:[%s6 + $0x18] sm:$0xff]
        %v738 = vld [vmem:[%s6 + $0x20] sm:$0xff]
        %v739 = vld [vmem:[%s6 + $0x28] sm:$0xff]
        %v740 = vld [vmem:[%s6 + $0x30] sm:$0xff]
        %v741 = vld [vmem:[%s6 + $0x38] sm:$0xff]
        %v742 = vld [vmem:[%s6 + $0x40] sm:$0xff]
        %v743 = vld [vmem:[%s6 + $0x48] sm:$0xff]
        %v744 = vld [vmem:[%s6 + $0x50] sm:$0xff]
        %v745 = vld [vmem:[%s6 + $0x58] sm:$0xff]
        %v746 = vld [vmem:[%s6 + $0x60] sm:$0xff]
        %v747 = vld [vmem:[%s6 + $0x68] sm:$0xff]
        %v748 = vld [vmem:[%s6 + $0x70] sm:$0xff]
        %v749 = vld [vmem:[%s6 + $0x78] sm:$0xff]
        %v750 = vld [vmem:[%s7] sm:$0xf]
        %v752 = vlaneseq
        %v753 = vshrl.u32 %v752, 7
        %v754 = vsub.s32 0, %v753
        %v755 = vrot.slane %v750, %v754
        %v756 = vlaneseq
        %v757 = vshrl.u32 %v756, 7
        %v758 = vsub.s32 1, %v757
        %v759 = vrot.slane %v750, %v758
        %v760 = vlaneseq
        %v761 = vshrl.u32 %v760, 7
        %v762 = vsub.s32 2, %v761
        %v763 = vrot.slane %v750, %v762
        %v764 = vlaneseq
        %v765 = vshrl.u32 %v764, 7
        %v766 = vsub.s32 3, %v765
        %v767 = vrot.slane %v750, %v766
        %vm772 = vcmask 261120
        %v774 = vsel %vm772, %v406, 0
        %776 = vmatprep.subr.mxu0 %v735
        %777 = vmatpush1.msra.mxu0 %v734
        %778 = vmatprep.subr.mxu0 %v739
        %779 = vmatpush1.msra.mxu0 %v738
        %780 = vmatprep.subr.mxu0 %v743
        %781 = vmatpush1.msra.mxu0 %v742
        %782 = vmatprep.subr.mxu0 %v747
        %783 = vmatpush1.msra.mxu0 %v746
        %784 = vmatprep.subr.mxu0 0.0
        %785 = vmatpush1.msra.mxu0 0.0
        %786 = vmatprep.subr.mxu0 0.0
        %787 = vmatpush1.msra.mxu0 0.0
        %788 = vmatprep.subr.mxu0 0.0
        %789 = vmatpush1.msra.mxu0 0.0
        %790 = vmatprep.subr.mxu0 0.0
        %791 = vmatpush1.msra.mxu0 0.0
        %792 = vmatprep.subr.mxu0 0.0
        %793 = vmatpush1.msra.mxu0 0.0
        %794 = vmatprep.subr.mxu0 0.0
        %795 = vmatpush1.msra.mxu0 0.0
        %796 = vmatprep.subr.mxu0 0.0
        %797 = vmatpush1.msra.mxu0 0.0
        %798 = vmatprep.subr.mxu0 0.0
        %799 = vmatpush1.msra.mxu0 0.0
        %800 = vmatprep.subr.mxu0 0.0
        %801 = vmatpush1.msra.mxu0 0.0
        %802 = vmatprep.subr.mxu0 0.0
        %803 = vmatpush1.msra.mxu0 0.0
        %804 = vmatprep.subr.mxu0 0.0
        %805 = vmatpush1.msra.mxu0 0.0
        %806 = vmatprep.subr.mxu0 0.0
        %807 = vmatpush1.msra.mxu0 0.0
        %808 = vmatprep.subr.mxu0 0.0
        %809 = vmatpush1.msra.mxu0 0.0
        %810 = vmatprep.subr.mxu0 0.0
        %811 = vmatpush1.msra.mxu0 0.0
        %812 = vmatprep.subr.mxu0 0.0
        %813 = vmatpush1.msra.mxu0 0.0
        %814 = vmatprep.subr.mxu0 0.0
        %815 = vmatpush1.msra.mxu0 0.0
        %816 = vmatprep.subr.mxu0 0.0
        %817 = vmatpush1.msra.mxu0 0.0
        %818 = vmatprep.subr.mxu0 0.0
        %819 = vmatpush1.msra.mxu0 0.0
        %820 = vmatprep.subr.mxu0 0.0
        %821 = vmatpush1.msra.mxu0 0.0
        %822 = vmatprep.subr.mxu0 0.0
        %823 = vmatpush1.msra.mxu0 0.0
        %824 = vmatprep.subr.mxu0 0.0
        %825 = vmatpush1.msra.mxu0 0.0
        %826 = vmatprep.subr.mxu0 0.0
        %827 = vmatpush1.msra.mxu0 0.0
        %828 = vmatprep.subr.mxu0 0.0
        %829 = vmatpush1.msra.mxu0 0.0
        %830 = vmatprep.subr.mxu0 0.0
        %831 = vmatpush1.msra.mxu0 0.0
        %832 = vmatprep.subr.mxu0 0.0
        %833 = vmatpush1.msra.mxu0 0.0
        %834 = vmatprep.subr.mxu0 0.0
        %835 = vmatpush1.msra.mxu0 0.0
        %836 = vmatprep.subr.mxu0 0.0
        %837 = vmatpush1.msra.mxu0 0.0
        %838 = vmatprep.subr.mxu0 0.0
        %839 = vmatpush1.msra.mxu0 0.0
        %840 = vmatprep.mubr.f32.mxu0 0.0
        %841 = vmatmul.mubr.f32.gmra.mrb[0].mxu0 %v774
        %v842 = vpop.f32.mrb[0].mxu0
        %v843 = vadd.f32 %v755, %v842
        %v844 = vpop.f32.mrb[0].mxu0
        %v845 = vadd.f32 %v759, %v844
        %846 = vdwg.mxu0
        %847 = vmatprep.subr.mxu0 %v737
        %848 = vmatpush1.msra.mxu0 %v736
        %849 = vmatprep.subr.mxu0 %v741
        %850 = vmatpush1.msra.mxu0 %v740
        %851 = vmatprep.subr.mxu0 %v745
        %852 = vmatpush1.msra.mxu0 %v744
        %853 = vmatprep.subr.mxu0 %v749
        %854 = vmatpush1.msra.mxu0 %v748
        %855 = vmatprep.subr.mxu0 0.0
        %856 = vmatpush1.msra.mxu0 0.0
        %857 = vmatprep.subr.mxu0 0.0
        %858 = vmatpush1.msra.mxu0 0.0
        %859 = vmatprep.subr.mxu0 0.0
        %860 = vmatpush1.msra.mxu0 0.0
        %861 = vmatprep.subr.mxu0 0.0
        %862 = vmatpush1.msra.mxu0 0.0
        %863 = vmatprep.subr.mxu0 0.0
        %864 = vmatpush1.msra.mxu0 0.0
        %865 = vmatprep.subr.mxu0 0.0
        %866 = vmatpush1.msra.mxu0 0.0
        %867 = vmatprep.subr.mxu0 0.0
        %868 = vmatpush1.msra.mxu0 0.0
        %869 = vmatprep.subr.mxu0 0.0
        %870 = vmatpush1.msra.mxu0 0.0
        %871 = vmatprep.subr.mxu0 0.0
        %872 = vmatpush1.msra.mxu0 0.0
        %873 = vmatprep.subr.mxu0 0.0
        %874 = vmatpush1.msra.mxu0 0.0
        %875 = vmatprep.subr.mxu0 0.0
        %876 = vmatpush1.msra.mxu0 0.0
        %877 = vmatprep.subr.mxu0 0.0
        %878 = vmatpush1.msra.mxu0 0.0
        %879 = vmatprep.subr.mxu0 0.0
        %880 = vmatpush1.msra.mxu0 0.0
        %881 = vmatprep.subr.mxu0 0.0
        %882 = vmatpush1.msra.mxu0 0.0
        %883 = vmatprep.subr.mxu0 0.0
        %884 = vmatpush1.msra.mxu0 0.0
        %885 = vmatprep.subr.mxu0 0.0
        %886 = vmatpush1.msra.mxu0 0.0
        %887 = vmatprep.subr.mxu0 0.0
        %888 = vmatpush1.msra.mxu0 0.0
        %889 = vmatprep.subr.mxu0 0.0
        %890 = vmatpush1.msra.mxu0 0.0
        %891 = vmatprep.subr.mxu0 0.0
        %892 = vmatpush1.msra.mxu0 0.0
        %893 = vmatprep.subr.mxu0 0.0
        %894 = vmatpush1.msra.mxu0 0.0
        %895 = vmatprep.subr.mxu0 0.0
        %896 = vmatpush1.msra.mxu0 0.0
        %897 = vmatprep.subr.mxu0 0.0
        %898 = vmatpush1.msra.mxu0 0.0
        %899 = vmatprep.subr.mxu0 0.0
        %900 = vmatpush1.msra.mxu0 0.0
        %901 = vmatprep.subr.mxu0 0.0
        %902 = vmatpush1.msra.mxu0 0.0
        %903 = vmatprep.subr.mxu0 0.0
        %904 = vmatpush1.msra.mxu0 0.0
        %905 = vmatprep.subr.mxu0 0.0
        %906 = vmatpush1.msra.mxu0 0.0
        %907 = vmatprep.subr.mxu0 0.0
        %908 = vmatpush1.msra.mxu0 0.0
        %909 = vmatprep.subr.mxu0 0.0
        %910 = vmatpush1.msra.mxu0 0.0
        %911 = vmatprep.mubr.f32.mxu0 0.0
        %912 = vmatmul.mubr.f32.gmra.mrb[0].mxu0 %v774
        %v913 = vpop.f32.mrb[0].mxu0
        %v914 = vadd.f32 %v763, %v913
        %v915 = vpop.f32.mrb[0].mxu0
        %v916 = vadd.f32 %v767, %v915
        %917 = vdwg.mxu0
        %918 = vmatprep.subr.mxu0 0.0
        %919 = vmatpush1.msra.mxu0 %v718
        %920 = vmatprep.subr.mxu0 0.0
        %921 = vmatpush1.msra.mxu0 %v719
        %922 = vmatprep.subr.mxu0 0.0
        %923 = vmatpush1.msra.mxu0 %v720
        %924 = vmatprep.subr.mxu0 0.0
        %925 = vmatpush1.msra.mxu0 %v721
        %926 = vmatprep.subr.mxu0 0.0
        %927 = vmatpush1.msra.mxu0 %v722
        %928 = vmatprep.subr.mxu0 0.0
        %929 = vmatpush1.msra.mxu0 %v723
        %930 = vmatprep.subr.mxu0 0.0
        %931 = vmatpush1.msra.mxu0 %v724
        %932 = vmatprep.subr.mxu0 0.0
        %933 = vmatpush1.msra.mxu0 %v725
        %934 = vmatprep.subr.mxu0 0.0
        %935 = vmatpush1.msra.mxu0 %v726
        %936 = vmatprep.subr.mxu0 0.0
        %937 = vmatpush1.msra.mxu0 %v727
        %938 = vmatprep.subr.mxu0 0.0
        %939 = vmatpush1.msra.mxu0 %v728
        %940 = vmatprep.subr.mxu0 0.0
        %941 = vmatpush1.msra.mxu0 %v729
        %942 = vmatprep.subr.mxu0 0.0
        %943 = vmatpush1.msra.mxu0 %v730
        %944 = vmatprep.subr.mxu0 0.0
        %945 = vmatpush1.msra.mxu0 %v731
        %946 = vmatprep.subr.mxu0 0.0
        %947 = vmatpush1.msra.mxu0 %v732
        %948 = vmatprep.subr.mxu0 0.0
        %949 = vmatpush1.msra.mxu0 %v733
        %950 = vmatprep.subr.mxu0 0.0
        %951 = vmatpush1.msra.mxu0 0.0
        %952 = vmatprep.subr.mxu0 0.0
        %953 = vmatpush1.msra.mxu0 0.0
        %954 = vmatprep.subr.mxu0 0.0
        %955 = vmatpush1.msra.mxu0 0.0
        %956 = vmatprep.subr.mxu0 0.0
        %957 = vmatpush1.msra.mxu0 0.0
        %958 = vmatprep.subr.mxu0 0.0
        %959 = vmatpush1.msra.mxu0 0.0
        %960 = vmatprep.subr.mxu0 0.0
        %961 = vmatpush1.msra.mxu0 0.0
        %962 = vmatprep.subr.mxu0 0.0
        %963 = vmatpush1.msra.mxu0 0.0
        %964 = vmatprep.subr.mxu0 0.0
        %965 = vmatpush1.msra.mxu0 0.0
        %966 = vmatprep.subr.mxu0 0.0
        %967 = vmatpush1.msra.mxu0 0.0
        %968 = vmatprep.subr.mxu0 0.0
        %969 = vmatpush1.msra.mxu0 0.0
        %970 = vmatprep.subr.mxu0 0.0
        %971 = vmatpush1.msra.mxu0 0.0
        %972 = vmatprep.subr.mxu0 0.0
        %973 = vmatpush1.msra.mxu0 0.0
        %974 = vmatprep.subr.mxu0 0.0
        %975 = vmatpush1.msra.mxu0 0.0
        %976 = vmatprep.subr.mxu0 0.0
        %977 = vmatpush1.msra.mxu0 0.0
        %978 = vmatprep.subr.mxu0 0.0
        %979 = vmatpush1.msra.mxu0 0.0
        %980 = vmatprep.subr.mxu0 0.0
        %981 = vmatpush1.msra.mxu0 0.0
        %982 = vmatprep.mubr.f32.mxu0 0.0
        %983 = vmatmul.mubr.f32.gmra.mrb[0].mxu0 %v843
        %v984 = vpop.f32.mrb[0].mxu0
        %v985 = vadd.f32 0.0, %v984
        %v986 = vpop.f32.mrb[0].mxu0
        %987 = vdwg.mxu0
        %vm988 = vcmask 130048
        %989 = vst.msk [vmem:[%s311] sm:$0xff] %vm988, %v985
        %990 = vmatprep.subr.mxu0 0.0
        %991 = vmatpush1.msra.mxu0 %v718
        %992 = vmatprep.subr.mxu0 0.0
        %993 = vmatpush1.msra.mxu0 %v719
        %994 = vmatprep.subr.mxu0 0.0
        %995 = vmatpush1.msra.mxu0 %v720
        %996 = vmatprep.subr.mxu0 0.0
        %997 = vmatpush1.msra.mxu0 %v721
        %998 = vmatprep.subr.mxu0 0.0
        %999 = vmatpush1.msra.mxu0 %v722
        %1000 = vmatprep.subr.mxu0 0.0
        %1001 = vmatpush1.msra.mxu0 %v723
        %1002 = vmatprep.subr.mxu0 0.0
        %1003 = vmatpush1.msra.mxu0 %v724
        %1004 = vmatprep.subr.mxu0 0.0
        %1005 = vmatpush1.msra.mxu0 %v725
        %1006 = vmatprep.subr.mxu0 0.0
        %1007 = vmatpush1.msra.mxu0 %v726
        %1008 = vmatprep.subr.mxu0 0.0
        %1009 = vmatpush1.msra.mxu0 %v727
        %1010 = vmatprep.subr.mxu0 0.0
        %1011 = vmatpush1.msra.mxu0 %v728
        %1012 = vmatprep.subr.mxu0 0.0
        %1013 = vmatpush1.msra.mxu0 %v729
        %1014 = vmatprep.subr.mxu0 0.0
        %1015 = vmatpush1.msra.mxu0 %v730
        %1016 = vmatprep.subr.mxu0 0.0
        %1017 = vmatpush1.msra.mxu0 %v731
        %1018 = vmatprep.subr.mxu0 0.0
        %1019 = vmatpush1.msra.mxu0 %v732
        %1020 = vmatprep.subr.mxu0 0.0
        %1021 = vmatpush1.msra.mxu0 %v733
        %1022 = vmatprep.subr.mxu0 0.0
        %1023 = vmatpush1.msra.mxu0 0.0
        %1024 = vmatprep.subr.mxu0 0.0
        %1025 = vmatpush1.msra.mxu0 0.0
        %1026 = vmatprep.subr.mxu0 0.0
        %1027 = vmatpush1.msra.mxu0 0.0
        %1028 = vmatprep.subr.mxu0 0.0
        %1029 = vmatpush1.msra.mxu0 0.0
        %1030 = vmatprep.subr.mxu0 0.0
        %1031 = vmatpush1.msra.mxu0 0.0
        %1032 = vmatprep.subr.mxu0 0.0
        %1033 = vmatpush1.msra.mxu0 0.0
        %1034 = vmatprep.subr.mxu0 0.0
        %1035 = vmatpush1.msra.mxu0 0.0
        %1036 = vmatprep.subr.mxu0 0.0
        %1037 = vmatpush1.msra.mxu0 0.0
        %1038 = vmatprep.subr.mxu0 0.0
        %1039 = vmatpush1.msra.mxu0 0.0
        %1040 = vmatprep.subr.mxu0 0.0
        %1041 = vmatpush1.msra.mxu0 0.0
        %1042 = vmatprep.subr.mxu0 0.0
        %1043 = vmatpush1.msra.mxu0 0.0
        %1044 = vmatprep.subr.mxu0 0.0
        %1045 = vmatpush1.msra.mxu0 0.0
        %1046 = vmatprep.subr.mxu0 0.0
        %1047 = vmatpush1.msra.mxu0 0.0
        %1048 = vmatprep.subr.mxu0 0.0
        %1049 = vmatpush1.msra.mxu0 0.0
        %1050 = vmatprep.subr.mxu0 0.0
        %1051 = vmatpush1.msra.mxu0 0.0
        %1052 = vmatprep.subr.mxu0 0.0
        %1053 = vmatpush1.msra.mxu0 0.0
        %1054 = vmatprep.mubr.f32.mxu0 0.0
        %1055 = vmatmul.mubr.f32.gmra.mrb[0].mxu0 %v845
        %v1056 = vpop.f32.mrb[0].mxu0
        %v1057 = vadd.f32 0.0, %v1056
        %v1058 = vpop.f32.mrb[0].mxu0
        %1059 = vdwg.mxu0
        %s1060 = scalar_lea.vmem %s311, 8 [#allocation2]
        %1061 = vst.msk [vmem:[%s1060] sm:$0xff] %vm988, %v1057
        %1062 = vmatprep.subr.mxu0 0.0
        %1063 = vmatpush1.msra.mxu0 %v718
        %1064 = vmatprep.subr.mxu0 0.0
        %1065 = vmatpush1.msra.mxu0 %v719
        %1066 = vmatprep.subr.mxu0 0.0
        %1067 = vmatpush1.msra.mxu0 %v720
        %1068 = vmatprep.subr.mxu0 0.0
        %1069 = vmatpush1.msra.mxu0 %v721
        %1070 = vmatprep.subr.mxu0 0.0
        %1071 = vmatpush1.msra.mxu0 %v722
        %1072 = vmatprep.subr.mxu0 0.0
        %1073 = vmatpush1.msra.mxu0 %v723
        %1074 = vmatprep.subr.mxu0 0.0
        %1075 = vmatpush1.msra.mxu0 %v724
        %1076 = vmatprep.subr.mxu0 0.0
        %1077 = vmatpush1.msra.mxu0 %v725
        %1078 = vmatprep.subr.mxu0 0.0
        %1079 = vmatpush1.msra.mxu0 %v726
        %1080 = vmatprep.subr.mxu0 0.0
        %1081 = vmatpush1.msra.mxu0 %v727
        %1082 = vmatprep.subr.mxu0 0.0
        %1083 = vmatpush1.msra.mxu0 %v728
        %1084 = vmatprep.subr.mxu0 0.0
        %1085 = vmatpush1.msra.mxu0 %v729
        %1086 = vmatprep.subr.mxu0 0.0
        %1087 = vmatpush1.msra.mxu0 %v730
        %1088 = vmatprep.subr.mxu0 0.0
        %1089 = vmatpush1.msra.mxu0 %v731
        %1090 = vmatprep.subr.mxu0 0.0
        %1091 = vmatpush1.msra.mxu0 %v732
        %1092 = vmatprep.subr.mxu0 0.0
        %1093 = vmatpush1.msra.mxu0 %v733
        %1094 = vmatprep.subr.mxu0 0.0
        %1095 = vmatpush1.msra.mxu0 0.0
        %1096 = vmatprep.subr.mxu0 0.0
        %1097 = vmatpush1.msra.mxu0 0.0
        %1098 = vmatprep.subr.mxu0 0.0
        %1099 = vmatpush1.msra.mxu0 0.0
        %1100 = vmatprep.subr.mxu0 0.0
        %1101 = vmatpush1.msra.mxu0 0.0
        %1102 = vmatprep.subr.mxu0 0.0
        %1103 = vmatpush1.msra.mxu0 0.0
        %1104 = vmatprep.subr.mxu0 0.0
        %1105 = vmatpush1.msra.mxu0 0.0
        %1106 = vmatprep.subr.mxu0 0.0
        %1107 = vmatpush1.msra.mxu0 0.0
        %1108 = vmatprep.subr.mxu0 0.0
        %1109 = vmatpush1.msra.mxu0 0.0
        %1110 = vmatprep.subr.mxu0 0.0
        %1111 = vmatpush1.msra.mxu0 0.0
        %1112 = vmatprep.subr.mxu0 0.0
        %1113 = vmatpush1.msra.mxu0 0.0
        %1114 = vmatprep.subr.mxu0 0.0
        %1115 = vmatpush1.msra.mxu0 0.0
        %1116 = vmatprep.subr.mxu0 0.0
        %1117 = vmatpush1.msra.mxu0 0.0
        %1118 = vmatprep.subr.mxu0 0.0
        %1119 = vmatpush1.msra.mxu0 0.0
        %1120 = vmatprep.subr.mxu0 0.0
        %1121 = vmatpush1.msra.mxu0 0.0
        %1122 = vmatprep.subr.mxu0 0.0
        %1123 = vmatpush1.msra.mxu0 0.0
        %1124 = vmatprep.subr.mxu0 0.0
        %1125 = vmatpush1.msra.mxu0 0.0
        %1126 = vmatprep.mubr.f32.mxu0 0.0
        %1127 = vmatmul.mubr.f32.gmra.mrb[0].mxu0 %v914
        %v1128 = vpop.f32.mrb[0].mxu0
        %v1129 = vadd.f32 0.0, %v1128
        %v1130 = vpop.f32.mrb[0].mxu0
        %1131 = vdwg.mxu0
        %s1132 = scalar_lea.vmem %s311, 16 [#allocation2]
        %1133 = vst.msk [vmem:[%s1132] sm:$0xff] %vm988, %v1129
        %1134 = vmatprep.subr.mxu0 0.0
        %1135 = vmatpush1.msra.mxu0 %v718
        %1136 = vmatprep.subr.mxu0 0.0
        %1137 = vmatpush1.msra.mxu0 %v719
        %1138 = vmatprep.subr.mxu0 0.0
        %1139 = vmatpush1.msra.mxu0 %v720
        %1140 = vmatprep.subr.mxu0 0.0
        %1141 = vmatpush1.msra.mxu0 %v721
        %1142 = vmatprep.subr.mxu0 0.0
        %1143 = vmatpush1.msra.mxu0 %v722
        %1144 = vmatprep.subr.mxu0 0.0
        %1145 = vmatpush1.msra.mxu0 %v723
        %1146 = vmatprep.subr.mxu0 0.0
        %1147 = vmatpush1.msra.mxu0 %v724
        %1148 = vmatprep.subr.mxu0 0.0
        %1149 = vmatpush1.msra.mxu0 %v725
        %1150 = vmatprep.subr.mxu0 0.0
        %1151 = vmatpush1.msra.mxu0 %v726
        %1152 = vmatprep.subr.mxu0 0.0
        %1153 = vmatpush1.msra.mxu0 %v727
        %1154 = vmatprep.subr.mxu0 0.0
        %1155 = vmatpush1.msra.mxu0 %v728
        %1156 = vmatprep.subr.mxu0 0.0
        %1157 = vmatpush1.msra.mxu0 %v729
        %1158 = vmatprep.subr.mxu0 0.0
        %1159 = vmatpush1.msra.mxu0 %v730
        %1160 = vmatprep.subr.mxu0 0.0
        %1161 = vmatpush1.msra.mxu0 %v731
        %1162 = vmatprep.subr.mxu0 0.0
        %1163 = vmatpush1.msra.mxu0 %v732
        %1164 = vmatprep.subr.mxu0 0.0
        %1165 = vmatpush1.msra.mxu0 %v733
        %1166 = vmatprep.subr.mxu0 0.0
        %1167 = vmatpush1.msra.mxu0 0.0
        %1168 = vmatprep.subr.mxu0 0.0
        %1169 = vmatpush1.msra.mxu0 0.0
        %1170 = vmatprep.subr.mxu0 0.0
        %1171 = vmatpush1.msra.mxu0 0.0
        %1172 = vmatprep.subr.mxu0 0.0
        %1173 = vmatpush1.msra.mxu0 0.0
        %1174 = vmatprep.subr.mxu0 0.0
        %1175 = vmatpush1.msra.mxu0 0.0
        %1176 = vmatprep.subr.mxu0 0.0
        %1177 = vmatpush1.msra.mxu0 0.0
        %1178 = vmatprep.subr.mxu0 0.0
        %1179 = vmatpush1.msra.mxu0 0.0
        %1180 = vmatprep.subr.mxu0 0.0
        %1181 = vmatpush1.msra.mxu0 0.0
        %1182 = vmatprep.subr.mxu0 0.0
        %1183 = vmatpush1.msra.mxu0 0.0
        %1184 = vmatprep.subr.mxu0 0.0
        %1185 = vmatpush1.msra.mxu0 0.0
        %1186 = vmatprep.subr.mxu0 0.0
        %1187 = vmatpush1.msra.mxu0 0.0
        %1188 = vmatprep.subr.mxu0 0.0
        %1189 = vmatpush1.msra.mxu0 0.0
        %1190 = vmatprep.subr.mxu0 0.0
        %1191 = vmatpush1.msra.mxu0 0.0
        %1192 = vmatprep.subr.mxu0 0.0
        %1193 = vmatpush1.msra.mxu0 0.0
        %1194 = vmatprep.subr.mxu0 0.0
        %1195 = vmatpush1.msra.mxu0 0.0
        %1196 = vmatprep.subr.mxu0 0.0
        %1197 = vmatpush1.msra.mxu0 0.0
        %1198 = vmatprep.mubr.f32.mxu0 0.0
        %1199 = vmatmul.mubr.f32.gmra.mrb[0].mxu0 %v916
        %v1200 = vpop.f32.mrb[0].mxu0
        %v1201 = vadd.f32 0.0, %v1200
        %v1202 = vpop.f32.mrb[0].mxu0
        %1203 = vdwg.mxu0
        %s1204 = scalar_lea.vmem %s311, 24 [#allocation2]
        %1205 = vst.msk [vmem:[%s1204] sm:$0xff] %vm988, %v1201
        %s1206 = sand.u32 %s208, 1
        %s1207 = scalar_lea.sflag [#allocation3], %s1206
        %s1208 = sand.u32 %s208, 1
        %s1209 = smul.addr %s1208, 32
        %s1210 = scalar_lea.vmem [#allocation2], %s1209
        // Predicated region
        $region53: #{tpu_custom_call.1} parent=51 // pred_check
          %p1211 = pneg %p218
        $region54: #{tpu_custom_call.1} parent=51 // pred_check_branch
          %1213 = sbr.rel (%p1211) target = $region56
        $region55: #{tpu_custom_call.1} parent=51 // pred_region
          %s1215 = ssub.s32 512, 512
          %1216 = vsyncadd %s1207, %s1215
          %s1217 = smul.addr %s22, 4
          %s1218 = smul.addr %s1217, 128
          %s1219 = scalar_lea.hbm %s8, %s1218
          %s1220 = sshll.u32 %s1210, 4
          %s1221 = int_to_ptr.vmem [resolvable:$true] %s1220
          %1226 = dma.vmem_to_hbm [thread:$0]  %s1221, 512, %s1219, %s1207, 128, 128, 8
        $region56: #{tpu_custom_call.1} parent=51 // pred_fallthru
          _
      $region52: #{tpu_custom_call.1} parent=5 // pred_fallthru
        _
      %p1227 = scmp.le.s32.totalorder 2, %s17
      // Predicated region
      $region57: #{tpu_custom_call.1} parent=5 // pred_check
        %p1228 = pneg %p1227
      $region58: #{tpu_custom_call.1} parent=5 // pred_check_branch
        %1230 = sbr.rel (%p1228) target = $region60
      $region59: #{tpu_custom_call.1} parent=5 // pred_region
        %s1231 = ssub.s32 %s17, 2
        // Predicated region
        $region61: #{tpu_custom_call.1} parent=59 // pred_check
          %p1232 = pneg %p224
        $region62: #{tpu_custom_call.1} parent=59 // pred_check_branch
          %1234 = sbr.rel (%p1232) target = $region64
        $region63: #{tpu_custom_call.1} parent=59 // pred_region
          %s1235 = sand.u32 %s209, 1
          %s1236 = scalar_lea.sflag [#allocation3], %s1235
          %s1237 = sand.u32 %s209, 1
          %s1238 = smul.addr %s1237, 32
          %s1239 = scalar_lea.vmem [#allocation2], %s1238
          %1240 = dma.done %s1236, 512
        $region64: #{tpu_custom_call.1} parent=59 // pred_fallthru
          _
      $region60: #{tpu_custom_call.1} parent=5 // pred_fallthru
        _
    $region6: #{tpu_custom_call.1} parent=1 // loop_footer
      %s21 = sadd.s32 1, %s17
    $region7: #{tpu_custom_call.1} parent=1 // loop_footer_branch
      %16 = sbr.rel target = $region3
    $region8: #{tpu_custom_call.1} parent=1 // loop_exit
      _
    %1241 = vsyncpa [#allocation3], 1
    %s1242 = scalar_lea.sflag [#allocation3], 1
    %1243 = vsyncpa %s1242, 1

</llo_original>
